<compile_context>
chip_gen: v6e
topology: v6e:2x2x1
jax: 0.10.0
libtpu: 0.0.40
codegen_flags: <defaults>
</compile_context>

<pallas_src>
import jax
import jax.numpy as jnp
from jax.experimental import pallas as pl
from jax.experimental.pallas import tpu as pltpu


def linear_kernel(x_ref, wt_ref, b_ref, o_ref):
    # x_ref: (TB, 11), wt_ref: (11, 5), b_ref: (1, 5), o_ref: (TB, 5)
    y = jnp.dot(x_ref[...], wt_ref[...], preferred_element_type=jnp.float32)
    o_ref[...] = (y + b_ref[...]).astype(o_ref.dtype)


def final_mapping_layer_forward(x, weight, bias, *, tb_max=2048):
    """x: (B, 11) f32, weight: (5, 11) f32 (PyTorch layout), bias: (5,) f32 -> (B, 5) f32.

    Tiles the batch dimension (TB <= tb_max) so the pipeline double-buffers batch
    tiles; weight/bias are loaded once and stay resident across all grid steps.
    """
    B, in_f = x.shape
    out_f = weight.shape[0]
    wt = weight.T                      # (11, 5) so the kernel is a plain x @ Wt
    b2 = bias.reshape(1, out_f)        # (1, 5)

    # Block shape rule: last two dims must be divisible by (8, 128) or equal the
    # full array dims. Feature dims (11, 5) are always full; TB is either full B
    # (small batches) or tb_max (multiple of 8).
    tb = B if B <= tb_max else tb_max
    grid = (pl.cdiv(B, tb),)

    return pl.pallas_call(
        linear_kernel,
        out_shape=jax.ShapeDtypeStruct((B, out_f), x.dtype),
        grid_spec=pl.GridSpec(
            grid=grid,
            in_specs=[
                pl.BlockSpec((tb, in_f), lambda i: (i, 0)),      # batch tile
                pl.BlockSpec((in_f, out_f), lambda i: (0, 0)),   # resident weight
                pl.BlockSpec((1, out_f), lambda i: (0, 0)),      # resident bias
            ],
            out_specs=pl.BlockSpec((tb, out_f), lambda i: (i, 0)),
        ),
        compiler_params=pltpu.CompilerParams(
            dimension_semantics=("parallel",)),  # lets v7x shard tiles across 2 TCs
    )(x, wt, b2)


def make_params(key):
    """Deterministic init mirroring nn.Linear(11, 5) + the custom __init__ edits."""
    in_f, out_f = 11, 5
    kw, kb = jax.random.split(key)
    bound = 1.0 / jnp.sqrt(jnp.float32(in_f))
    weight = jax.random.uniform(kw, (out_f, in_f), jnp.float32, -bound, bound)
    bias = jax.random.uniform(kb, (out_f,), jnp.float32, -bound, bound)
    # weight[row, col] += 10 at the specified positions, then /= 10 (as in __init__)
    rows = jnp.array([0, 3, 4, 4, 2, 2, 1, 1, 2, 4, 4], dtype=jnp.int32)
    cols = jnp.array([0, 1, 2, 3, 4, 5, 6, 7, 8, 9, 10], dtype=jnp.int32)
    weight = weight.at[rows, cols].add(10.0)
    weight = weight / 10.0
    bias = bias / 10.0
    return weight, bias


if __name__ == "__main__":
    key = jax.random.PRNGKey(0)
    k_x, k_p, k_x2 = jax.random.split(key, 3)
    weight, bias = make_params(k_p)

    # Small-batch case (matches the module's typical use; single grid step).
    B = 8
    x = jax.random.normal(k_x, (B, 11), dtype=jnp.float32)
    out = jax.block_until_ready(final_mapping_layer_forward(x, weight, bias))
    ref = x @ weight.T + bias
    assert out.shape == (B, 5)
    assert jnp.allclose(out, ref, atol=1e-5, rtol=1e-5)

    # Larger batch exercises the tiled / multi-step pipelined path.
    B2 = 4096
    x2 = jax.random.normal(k_x2, (B2, 11), dtype=jnp.float32)
    out2 = jax.block_until_ready(final_mapping_layer_forward(x2, weight, bias))
    ref2 = x2 @ weight.T + bias
    assert out2.shape == (B2, 5)
    assert jnp.allclose(out2, ref2, atol=1e-5, rtol=1e-5)

    print("KERNEL_OK")
</pallas_src>

<mosaic_0001>
module attributes {stable_mosaic.version = 11 : i64} {
  func.func @linear_kernel(%arg0: i32, %arg1: memref<8x11xf32, #tpu.memory_space<vmem>>, %arg2: memref<11x5xf32, #tpu.memory_space<vmem>>, %arg3: memref<1x5xf32, #tpu.memory_space<vmem>>, %arg4: memref<8x5xf32, #tpu.memory_space<vmem>>) attributes {dimension_semantics = [#tpu.dimension_semantics<parallel>], iteration_bounds = array<i64: 1>, scalar_prefetch = 0 : i64, scratch_operands = 0 : i64, tpu.core_type = #tpu.core_type<tc>, window_params = [{transform_indices = @transform_0, window_bounds = array<i64: 8, 11>}, {pipeline_mode = #tpu.pipeline_mode<synchronous>, transform_indices = @transform_1, window_bounds = array<i64: 11, 5>}, {pipeline_mode = #tpu.pipeline_mode<synchronous>, transform_indices = @transform_2, window_bounds = array<i64: 1, 5>}, {transform_indices = @transform_3, window_bounds = array<i64: 8, 5>}]} {
    %c0 = arith.constant 0 : index
    %c0_0 = arith.constant 0 : index
    %0 = vector.load %arg1[%c0, %c0_0] : memref<8x11xf32, #tpu.memory_space<vmem>>, vector<8x11xf32>
    %c0_1 = arith.constant 0 : index
    %c0_2 = arith.constant 0 : index
    %1 = vector.load %arg2[%c0_1, %c0_2] : memref<11x5xf32, #tpu.memory_space<vmem>>, vector<11x5xf32>
    %cst = arith.constant dense<0.000000e+00> : vector<8x5xf32>
    %2 = tpu.matmul %0, %1, %cst {dimension_numbers = #tpu.dot_dimension_numbers<[1], [0], [0], [1], [0, 0, 1, 1], [], []>} : vector<8x11xf32>, vector<11x5xf32>, vector<8x5xf32> -> vector<8x5xf32>
    %c0_3 = arith.constant 0 : index
    %c0_4 = arith.constant 0 : index
    %3 = vector.load %arg3[%c0_3, %c0_4] : memref<1x5xf32, #tpu.memory_space<vmem>>, vector<1x5xf32>
    %4 = vector.broadcast %3 : vector<1x5xf32> to vector<8x5xf32>
    %5 = arith.addf %2, %4 : vector<8x5xf32>
    %c0_5 = arith.constant 0 : index
    %c0_6 = arith.constant 0 : index
    %6 = vector.load %arg4[%c0_5, %c0_6] : memref<8x5xf32, #tpu.memory_space<vmem>>, vector<8x5xf32>
    tpu.vector_store %arg4[%c0_5, %c0_6], %5 {strides = array<i32>} : memref<8x5xf32, #tpu.memory_space<vmem>>, vector<8x5xf32>,
    return
  }
  func.func @transform_0(%arg0: i32) -> (i32, i32) {
    %c0_i32 = arith.constant 0 : i32
    %c0_i32_0 = arith.constant 0 : i32
    return %arg0, %c0_i32 : i32, i32
  }
  func.func @transform_1(%arg0: i32) -> (i32, i32) {
    %c0_i32 = arith.constant 0 : i32
    %c0_i32_0 = arith.constant 0 : i32
    %c0_i32_1 = arith.constant 0 : i32
    return %c0_i32, %c0_i32_0 : i32, i32
  }
  func.func @transform_2(%arg0: i32) -> (i32, i32) {
    %c0_i32 = arith.constant 0 : i32
    %c0_i32_0 = arith.constant 0 : i32
    %c0_i32_1 = arith.constant 0 : i32
    return %c0_i32, %c0_i32_0 : i32, i32
  }
  func.func @transform_3(%arg0: i32) -> (i32, i32) {
    %c0_i32 = arith.constant 0 : i32
    %c0_i32_0 = arith.constant 0 : i32
    return %arg0, %c0_i32 : i32, i32
  }
}

</mosaic_0001>

<llo_original>
// kernel: tpu_custom_call.1
$region0: #{tpu_custom_call.1}
  #allocation0 [shape = 'u32[]', space=smem, size = 0x4, offset = 0x4, fixed_abs, tag = 'smem constant byte address 0x4 - core index']
  #allocation1 [shape = 'u32[144,128]{1,0:T(1,128)}', space=vmem, size = 0x12000, scoped, tag = 'internal scratch']
  %s0 = inlined_call_operand.vmem [shape: f32[8,11], index: 0, kind: input, shape index: {}]
  %s1 = inlined_call_operand.vmem [shape: f32[11,5], index: 1, kind: input, shape index: {}]
  %s2 = inlined_call_operand.vmem [shape: f32[1,5], index: 2, kind: input, shape index: {}]
  %s3 = inlined_call_operand.hbm [shape: f32[8,5], index: 3, kind: output, shape index: {}]
  %s4 = sld [smem:[#allocation0]]
  $region22: #{tpu_custom_call.1} parent=0
    _
  %s6 = ssub.s32 1, %s4
  %s7 = scalar_select 0, %s6, %s4
  $region1: #{tpu_custom_call.1} parent=0
    #allocation2 [shape = 'u8[4096]{0}', space=vmem, size = 0x1000, scoped, tag = 'output window, operand 0, single buffered']
    #allocation3 [shape = 's32[1]{0}', space=sflag, size = 0x4, scoped, tag = 'scoped memory for tpu_custom_call.1']
    %8 = vsyncpa [#allocation3], 0
    // Predicated region
    $region2: #{tpu_custom_call.1} parent=1 // pred_check
      _
    $region3: #{tpu_custom_call.1} parent=1 // pred_check_branch
      %10 = sbr.rel (0) target = $region5
    $region4: #{tpu_custom_call.1} parent=1 // pred_region
      _
    $region5: #{tpu_custom_call.1} parent=1 // pred_fallthru
      _
    // Predicated region
    $region6: #{tpu_custom_call.1} parent=1 // pred_check
      _
    $region7: #{tpu_custom_call.1} parent=1 // pred_check_branch
      %12 = sbr.rel (0) target = $region9
    $region8: #{tpu_custom_call.1} parent=1 // pred_region
      _
    $region9: #{tpu_custom_call.1} parent=1 // pred_fallthru
      _
    // Predicated region
    $region10: #{tpu_custom_call.1} parent=1 // pred_check
      _
    $region11: #{tpu_custom_call.1} parent=1 // pred_check_branch
      %14 = sbr.rel (0) target = $region13
    $region12: #{tpu_custom_call.1} parent=1 // pred_region
      _
    $region13: #{tpu_custom_call.1} parent=1 // pred_fallthru
      _
    %v15 = vld [vmem:[%s0] sm:$0xff]
    %v16 = vld [vmem:[%s1] sm:$0xff]
    %v17 = vld [vmem:[%s1 + $0x8] sm:$0x7]
    %v18 = vld [vmem:[%s2] sm:$0x1]
    %v20 = vlaneseq
    %v21 = vshrl.u32 %v20, 7
    %v22 = vsub.s32 0, %v21
    %v23 = vrot.slane %v18, %v22
    %vm25 = vcmask 89088
    %v27 = vsel %vm25, %v15, 0
    %vm29 = vcmask 1042432
    %v31 = vsel %vm29, %v17, 0
    %33 = vmatprep.subr.mxu0 0.0
    %34 = vmatpush1.msra.mxu0 0.0
    %35 = vmatprep.subr.mxu0 0.0
    %36 = vmatpush1.msra.mxu0 0.0
    %37 = vmatprep.subr.mxu0 0.0
    %38 = vmatpush1.msra.mxu0 0.0
    %39 = vmatprep.subr.mxu0 0.0
    %40 = vmatpush1.msra.mxu0 0.0
    %41 = vmatprep.subr.mxu0 0.0
    %42 = vmatpush1.msra.mxu0 0.0
    %43 = vmatprep.subr.mxu0 0.0
    %44 = vmatpush1.msra.mxu0 0.0
    %45 = vmatprep.subr.mxu0 0.0
    %46 = vmatpush1.msra.mxu0 0.0
    %47 = vmatprep.subr.mxu0 0.0
    %48 = vmatpush1.msra.mxu0 0.0
    %49 = vmatprep.subr.mxu0 0.0
    %50 = vmatpush1.msra.mxu0 0.0
    %51 = vmatprep.subr.mxu0 0.0
    %52 = vmatpush1.msra.mxu0 0.0
    %53 = vmatprep.subr.mxu0 0.0
    %54 = vmatpush1.msra.mxu0 0.0
    %55 = vmatprep.subr.mxu0 0.0
    %56 = vmatpush1.msra.mxu0 0.0
    %57 = vmatprep.subr.mxu0 0.0
    %58 = vmatpush1.msra.mxu0 0.0
    %59 = vmatprep.subr.mxu0 0.0
    %60 = vmatpush1.msra.mxu0 0.0
    %61 = vmatprep.subr.mxu0 0.0
    %62 = vmatpush1.msra.mxu0 %v31
    %63 = vmatprep.subr.mxu0 0.0
    %64 = vmatpush1.msra.mxu0 %v16
    %65 = vmatprep.subr.mxu0 0.0
    %66 = vmatpush2.msra.mxu0 0.0
    %67 = vmatprep.subr.mxu0 0.0
    %68 = vmatpush2.msra.mxu0 0.0
    %69 = vmatprep.subr.mxu0 0.0
    %70 = vmatpush2.msra.mxu0 0.0
    %71 = vmatprep.subr.mxu0 0.0
    %72 = vmatpush2.msra.mxu0 0.0
    %73 = vmatprep.subr.mxu0 0.0
    %74 = vmatpush2.msra.mxu0 0.0
    %75 = vmatprep.subr.mxu0 0.0
    %76 = vmatpush2.msra.mxu0 0.0
    %77 = vmatprep.subr.mxu0 0.0
    %78 = vmatpush2.msra.mxu0 0.0
    %79 = vmatprep.subr.mxu0 0.0
    %80 = vmatpush2.msra.mxu0 0.0
    %81 = vmatprep.subr.mxu0 0.0
    %82 = vmatpush2.msra.mxu0 0.0
    %83 = vmatprep.subr.mxu0 0.0
    %84 = vmatpush2.msra.mxu0 0.0
    %85 = vmatprep.subr.mxu0 0.0
    %86 = vmatpush2.msra.mxu0 0.0
    %87 = vmatprep.subr.mxu0 0.0
    %88 = vmatpush2.msra.mxu0 0.0
    %89 = vmatprep.subr.mxu0 0.0
    %90 = vmatpush2.msra.mxu0 0.0
    %91 = vmatprep.subr.mxu0 0.0
    %92 = vmatpush2.msra.mxu0 0.0
    %93 = vmatprep.subr.mxu0 0.0
    %94 = vmatpush2.msra.mxu0 0.0
    %95 = vmatprep.subr.mxu0 0.0
    %96 = vmatpush2.msra.mxu0 0.0
    %97 = vmatprep.mubr.f32.mxu0 0.0
    %98 = vmatmul.mubr.f32.gmra.mxu0 %v27
    %v99 = vpop.f32.mrf.mxu0
    %v100 = vadd.f32 %v23, %v99
    %v101 = vpop.f32.mrf.mxu0
    %102 = vdwg.mxu0
    %vm103 = vcmask 39936
    %104 = vst.msk [vmem:[#allocation2] sm:$0xff] %vm103, %v100
    // Predicated region
    $region14: #{tpu_custom_call.1} parent=1 // pred_check
      _
    $region15: #{tpu_custom_call.1} parent=1 // pred_check_branch
      %106 = sbr.rel (0) target = $region17
    $region16: #{tpu_custom_call.1} parent=1 // pred_region
      %s108 = ssub.s32 128, 128
      %109 = vsyncadd [#allocation3], %s108
      %s111 = sshll.u32 [#allocation2], 4
      %s112 = int_to_ptr.vmem [resolvable:$true] %s111
      %114 = dma.vmem_to_hbm [thread:$0]  %s112, 128, %s3, [#allocation3]
    $region17: #{tpu_custom_call.1} parent=1 // pred_fallthru
      _
    // Predicated region
    $region18: #{tpu_custom_call.1} parent=1 // pred_check
      _
    $region19: #{tpu_custom_call.1} parent=1 // pred_check_branch
      %116 = sbr.rel (0) target = $region21
    $region20: #{tpu_custom_call.1} parent=1 // pred_region
      %117 = dma.done [#allocation3], 128
    $region21: #{tpu_custom_call.1} parent=1 // pred_fallthru
      _
    %118 = vsyncpa [#allocation3], 1

</llo_original>
